<compile_context>
chip_gen: v7x
topology: tpu7x:2x2x1
jax: 0.10.0
libtpu: 0.0.40
codegen_flags: <defaults>
</compile_context>

<pallas_src>
import functools

import jax
import jax.numpy as jnp
from jax.experimental import pallas as pl
from jax.experimental.pallas import tpu as pltpu

LANE = 128


# ----------------------------------------------------------------------------
# Pallas kernel: full Net.forward on one (TB, state_dim) batch tile
# ----------------------------------------------------------------------------
def _net_kernel(x_ref, w1_ref, wmid_ref, whead_ref, v_ref, out_ref,
                *, hidden_dim, action_dim):
    x = x_ref[...].astype(jnp.float32)            # [TB, state_dim]

    # ---- hoist all bias / gamma / beta loads (one small slab read) ----
    vecs = v_ref[...].astype(jnp.float32)         # [8, 256]
    b1   = vecs[0:1, 0:LANE]
    g1   = vecs[1:2, 0:LANE]
    be1  = vecs[2:3, 0:LANE]
    b2   = vecs[3:4, 0:LANE]
    b_ac = vecs[4:5, :]                           # [1, 256] fused actor|critic bias
    g_a  = vecs[5:6, 0:LANE]
    g_c  = vecs[5:6, LANE:2 * LANE]
    be_a = vecs[6:7, 0:LANE]
    be_c = vecs[6:7, LANE:2 * LANE]
    b_hd = vecs[7:8, 0:LANE]                      # logits bias + value bias (lane A)

    lane = jax.lax.broadcasted_iota(jnp.int32, (1, LANE), 1)
    m_hid = lane < hidden_dim
    m_act = lane < action_dim

    def ln_masked(h, g, b, eps=1e-5):
        # h's padded lanes are exactly zero by construction (zero-padded W cols/bias).
        mu = jnp.sum(h, axis=-1, keepdims=True) * (1.0 / hidden_dim)
        d = jnp.where(m_hid, h - mu, 0.0)
        var = jnp.sum(d * d, axis=-1, keepdims=True) * (1.0 / hidden_dim)
        return d * jax.lax.rsqrt(var + eps) * g + b   # padded lanes -> 0 (g,b padded 0)

    # ---- state_embed: Linear -> LayerNorm -> ReLU -> Linear -> ReLU ----
    h = jnp.dot(x, w1_ref[...], preferred_element_type=jnp.float32) + b1
    h = jnp.maximum(ln_masked(h, g1, be1), 0.0)
    h = jnp.dot(h, wmid_ref[:, 0:LANE], preferred_element_type=jnp.float32) + b2
    h = jnp.maximum(h, 0.0)

    # ---- fused actor/critic first layers: one [TB,128] @ [128,256] matmul ----
    y = jnp.dot(h, wmid_ref[:, LANE:3 * LANE],
                preferred_element_type=jnp.float32) + b_ac
    a = jnp.maximum(ln_masked(y[:, 0:LANE], g_a, be_a), 0.0)          # actor hidden
    c = jnp.maximum(ln_masked(y[:, LANE:2 * LANE], g_c, be_c), 0.0)   # critic hidden

    # ---- fused heads: ONE K=256 matmul against the stacked [256,128] block.
    # Result is packed lane-dense: lanes 0..A-1 logits, lane A value.
    ac = jnp.concatenate([a, c], axis=-1)                             # [TB, 256]
    y2 = jnp.dot(ac, whead_ref[...], preferred_element_type=jnp.float32) + b_hd

    # ---- PolicyNet post-processing (masked softmax over action lanes) ----
    NEG = jnp.float32(-1e30)
    logits = jnp.where(m_act, y2 + 1e-5, NEG)
    mx = jnp.max(logits, axis=-1, keepdims=True)
    z = logits - mx
    p = jnp.exp(z)                                          # masked lanes -> 0
    lse = jnp.log(jnp.sum(p, axis=-1, keepdims=True))
    log_sm = z - lse
    max_l = jnp.max(log_sm, axis=-1, keepdims=True)
    log_sm = jnp.clip(log_sm - max_l, -1e10, 1.0)
    sm = jnp.where(m_act, jnp.exp(log_sm) + 1e-5, 0.0)
    probs = sm / jnp.sum(sm, axis=-1, keepdims=True)

    # Lane-dense packed output: probs in lanes [0,A), value at lane A, zeros after.
    out_ref[...] = jnp.where(m_act, probs,
                             jnp.where(lane == action_dim, y2, 0.0))


# ----------------------------------------------------------------------------
# Parameter construction (deterministic, PyTorch-style uniform init)
# ----------------------------------------------------------------------------
def _init_linear(key, fan_in, fan_out):
    kw, kb = jax.random.split(key)
    bound = 1.0 / jnp.sqrt(float(fan_in))
    # stored as [in, out] so every matmul is x @ W
    w = jax.random.uniform(kw, (fan_in, fan_out), jnp.float32, -bound, bound)
    b = jax.random.uniform(kb, (1, fan_out), jnp.float32, -bound, bound)
    return w, b


def _init_layernorm(dim):
    return jnp.ones((1, dim), jnp.float32), jnp.zeros((1, dim), jnp.float32)


def make_net_params(key, state_dim, hidden_dim, action_dim):
    keys = jax.random.split(key, 6)
    w1, b1 = _init_linear(keys[0], state_dim, hidden_dim)
    g1, be1 = _init_layernorm(hidden_dim)
    w2, b2 = _init_linear(keys[1], hidden_dim, hidden_dim)

    wa1, ba1 = _init_linear(keys[2], hidden_dim, hidden_dim)
    ga, bea = _init_layernorm(hidden_dim)
    wa2, ba2 = _init_linear(keys[3], hidden_dim, action_dim)

    wc1, bc1 = _init_linear(keys[4], hidden_dim, hidden_dim)
    gc, bec = _init_layernorm(hidden_dim)
    wc2, bc2 = _init_linear(keys[5], hidden_dim, 1)

    return (w1, b1, g1, be1, w2, b2,
            wa1, ba1, ga, bea, wa2, ba2,
            wc1, bc1, gc, bec, wc2, bc2)


# ----------------------------------------------------------------------------
# Pack the 18 logical tensors into lane-aligned VMEM slabs
#   w1_slab   [state_dim, 128] : W1 (cols 0..hidden-1 live)
#   w_mid     [128, 384]       : W2 | W_ac1 (actor|critic fused, 256 wide)
#   w_head    [256, 128]       : rows 0..127 actor head, rows 128..255 critic head
#   vec_slab  [8, 256]         : biases / LayerNorm gammas / betas, one row each
# ----------------------------------------------------------------------------
def pack_params(params, state_dim, hidden_dim, action_dim):
    (w1, b1, g1, be1, w2, b2,
     wa1, ba1, ga, bea, wa2, ba2,
     wc1, bc1, gc, bec, wc2, bc2) = params

    def pad_w(w):
        out = jnp.zeros((LANE, LANE), jnp.float32)
        return out.at[:w.shape[0], :w.shape[1]].set(w)

    # first layer kept at its real contraction width (state_dim) so x needs no
    # lane padding in HBM.
    w1_slab = jnp.zeros((state_dim, LANE), jnp.float32).at[:, :hidden_dim].set(w1)

    w2p = pad_w(w2)                       # hidden -> hidden
    wa1p = pad_w(wa1)                     # actor first layer
    wc1p = pad_w(wc1)                     # critic first layer (fused with actor's)
    w_mid = jnp.concatenate([w2p, wa1p, wc1p], axis=1)          # [128, 384]

    # stacked head block: actor rows on top, critic rows below -> one K=256 dot.
    w_head = jnp.zeros((2 * LANE, LANE), jnp.float32)
    w_head = w_head.at[:hidden_dim, :action_dim].set(wa2)                        # logits
    w_head = w_head.at[LANE:LANE + hidden_dim, action_dim:action_dim + 1].set(wc2)  # value

    def row(v, offset=0):
        r = jnp.zeros((1, 2 * LANE), jnp.float32)
        return r.at[:, offset:offset + v.shape[-1]].set(v.reshape(1, -1))

    vec_slab = jnp.concatenate([
        row(b1), row(g1), row(be1), row(b2),
        row(ba1) + row(bc1, offset=LANE),
        row(ga) + row(gc, offset=LANE),
        row(bea) + row(bec, offset=LANE),
        row(ba2) + row(bc2, offset=action_dim),
    ], axis=0)                                                   # [8, 256]
    return w1_slab, w_mid, w_head, vec_slab


# ----------------------------------------------------------------------------
# Wrapper calling pallas_call (batch-tiled, parallel grid)
# ----------------------------------------------------------------------------
def _round_up(n, m):
    return ((n + m - 1) // m) * m


@functools.partial(jax.jit, static_argnames=("hidden_dim", "action_dim"))
def net_forward(x, w1_slab, w_mid, w_head, vec_slab, hidden_dim, action_dim):
    B, state_dim = x.shape

    # Large tiles (up to 2048 rows) amortize per-grid-step overhead; cdiv(B,2)
    # keeps the "parallel" grid at >=2 steps for big batches so both v7x
    # TensorCores are used.  VMEM at TB=2048 is ~3 MiB total -> no vmem_limit
    # override needed on any generation (v5e default 16 MiB is ample).
    TB = max(8, min(2048, _round_up(-(-B // 2), 8)))
    B_pad = _round_up(B, TB)

    xp = x.astype(jnp.float32)
    if B_pad != B:                                  # pad rows only (no lane padding)
        xp = jnp.pad(xp, ((0, B_pad - B), (0, 0)))

    kernel = functools.partial(_net_kernel,
                               hidden_dim=hidden_dim, action_dim=action_dim)

    out = pl.pallas_call(
        kernel,
        out_shape=jax.ShapeDtypeStruct((B_pad, LANE), jnp.float32),
        grid_spec=pltpu.PrefetchScalarGridSpec(
            num_scalar_prefetch=0,
            grid=(B_pad // TB,),
            in_specs=[
                pl.BlockSpec((TB, state_dim), lambda i: (i, 0)),   # x tile streams
                pl.BlockSpec(w1_slab.shape, lambda i: (0, 0)),     # weights resident
                pl.BlockSpec(w_mid.shape, lambda i: (0, 0)),
                pl.BlockSpec(w_head.shape, lambda i: (0, 0)),
                pl.BlockSpec(vec_slab.shape, lambda i: (0, 0)),
            ],
            out_specs=pl.BlockSpec((TB, LANE), lambda i: (i, 0)),
        ),
        compiler_params=pltpu.CompilerParams(
            dimension_semantics=("parallel",)),
    )(xp, w1_slab, w_mid, w_head, vec_slab)

    # Single read of the packed slab, then split the small (B, A+1) strip.
    packed = out[:B, :action_dim + 1]
    probs = packed[:, :action_dim]
    value = packed[:, action_dim:]
    return probs, value


# ----------------------------------------------------------------------------
# Plain-JAX reference (for the sanity check)
# ----------------------------------------------------------------------------
def net_forward_ref(x, params):
    (w1, b1, g1, be1, w2, b2,
     wa1, ba1, ga, bea, wa2, ba2,
     wc1, bc1, gc, bec, wc2, bc2) = params

    def ln(h, g, b, eps=1e-5):
        mu = jnp.mean(h, axis=-1, keepdims=True)
        var = jnp.mean((h - mu) ** 2, axis=-1, keepdims=True)
        return (h - mu) / jnp.sqrt(var + eps) * g + b

    h = jnp.maximum(ln(x @ w1 + b1, g1, be1), 0.0)
    h = jnp.maximum(h @ w2 + b2, 0.0)

    a = jnp.maximum(ln(h @ wa1 + ba1, ga, bea), 0.0)
    logits = a @ wa2 + ba2 + 1e-5
    log_softmax = jax.nn.log_softmax(logits, axis=-1)
    max_l = jnp.max(log_softmax, axis=-1, keepdims=True)
    log_softmax = jnp.clip(log_softmax - max_l, -1e10, 1.0)
    sm = jnp.exp(log_softmax) + 1e-5
    probs = sm / jnp.sum(sm, axis=-1, keepdims=True)

    c = jnp.maximum(ln(h @ wc1 + bc1, gc, bec), 0.0)
    value = c @ wc2 + bc2
    return probs, value


if __name__ == "__main__":
    batch, state_dim, hidden_dim, action_dim = 8, 16, 32, 8

    key = jax.random.PRNGKey(0)
    k_x, k_p = jax.random.split(key)
    x = jax.random.normal(k_x, (batch, state_dim), jnp.float32)
    params = make_net_params(k_p, state_dim, hidden_dim, action_dim)
    slabs = pack_params(params, state_dim, hidden_dim, action_dim)

    probs, value = net_forward(x, *slabs, hidden_dim=hidden_dim,
                               action_dim=action_dim)
    jax.block_until_ready((probs, value))

    probs_ref, value_ref = net_forward_ref(x, params)
    assert probs.shape == (batch, action_dim)
    assert value.shape == (batch, 1)
    assert jnp.allclose(probs, probs_ref, atol=1e-5, rtol=1e-5)
    assert jnp.allclose(value, value_ref, atol=1e-5, rtol=1e-5)
    assert jnp.allclose(jnp.sum(probs, axis=-1), 1.0, atol=1e-5)

    # exercise batch padding + a multi-step grid (B not a multiple of the tile)
    x37 = jax.random.normal(jax.random.PRNGKey(1), (37, state_dim), jnp.float32)
    p37, v37 = net_forward(x37, *slabs, hidden_dim=hidden_dim,
                           action_dim=action_dim)
    jax.block_until_ready((p37, v37))
    p37_ref, v37_ref = net_forward_ref(x37, params)
    assert jnp.allclose(p37, p37_ref, atol=1e-5, rtol=1e-5)
    assert jnp.allclose(v37, v37_ref, atol=1e-5, rtol=1e-5)

    print("KERNEL_OK")
</pallas_src>

<mosaic_0001>
module attributes {stable_mosaic.version = 11 : i64} {
  func.func @_net_kernel(%arg0: i32, %arg1: memref<8x16xf32, #tpu.memory_space<vmem>>, %arg2: memref<16x128xf32, #tpu.memory_space<vmem>>, %arg3: memref<128x384xf32, #tpu.memory_space<vmem>>, %arg4: memref<256x128xf32, #tpu.memory_space<vmem>>, %arg5: memref<8x256xf32, #tpu.memory_space<vmem>>, %arg6: memref<8x128xf32, #tpu.memory_space<vmem>>) attributes {dimension_semantics = [#tpu.dimension_semantics<parallel>], iteration_bounds = array<i64: 1>, scalar_prefetch = 0 : i64, scratch_operands = 0 : i64, tpu.core_type = #tpu.core_type<tc>, window_params = [{transform_indices = @transform_0, window_bounds = array<i64: 8, 16>}, {pipeline_mode = #tpu.pipeline_mode<synchronous>, transform_indices = @transform_1, window_bounds = array<i64: 16, 128>}, {pipeline_mode = #tpu.pipeline_mode<synchronous>, transform_indices = @transform_2, window_bounds = array<i64: 128, 384>}, {pipeline_mode = #tpu.pipeline_mode<synchronous>, transform_indices = @transform_3, window_bounds = array<i64: 256, 128>}, {pipeline_mode = #tpu.pipeline_mode<synchronous>, transform_indices = @transform_4, window_bounds = array<i64: 8, 256>}, {transform_indices = @transform_5, window_bounds = array<i64: 8, 128>}]} {
    %c0 = arith.constant 0 : index
    %c0_0 = arith.constant 0 : index
    %0 = vector.load %arg1[%c0, %c0_0] : memref<8x16xf32, #tpu.memory_space<vmem>>, vector<8x16xf32>
    %c0_1 = arith.constant 0 : index
    %c0_2 = arith.constant 0 : index
    %1 = vector.load %arg5[%c0_1, %c0_2] : memref<8x256xf32, #tpu.memory_space<vmem>>, vector<8x256xf32>
    %2 = vector.extract_strided_slice %1 {offsets = [0, 0], sizes = [1, 128], strides = [1, 1]} : vector<8x256xf32> to vector<1x128xf32>
    %3 = vector.extract_strided_slice %1 {offsets = [1, 0], sizes = [1, 128], strides = [1, 1]} : vector<8x256xf32> to vector<1x128xf32>
    %4 = vector.extract_strided_slice %1 {offsets = [2, 0], sizes = [1, 128], strides = [1, 1]} : vector<8x256xf32> to vector<1x128xf32>
    %5 = vector.extract_strided_slice %1 {offsets = [3, 0], sizes = [1, 128], strides = [1, 1]} : vector<8x256xf32> to vector<1x128xf32>
    %6 = vector.extract_strided_slice %1 {offsets = [4, 0], sizes = [1, 256], strides = [1, 1]} : vector<8x256xf32> to vector<1x256xf32>
    %7 = vector.extract_strided_slice %1 {offsets = [5, 0], sizes = [1, 128], strides = [1, 1]} : vector<8x256xf32> to vector<1x128xf32>
    %8 = vector.extract_strided_slice %1 {offsets = [5, 128], sizes = [1, 128], strides = [1, 1]} : vector<8x256xf32> to vector<1x128xf32>
    %9 = vector.extract_strided_slice %1 {offsets = [6, 0], sizes = [1, 128], strides = [1, 1]} : vector<8x256xf32> to vector<1x128xf32>
    %10 = vector.extract_strided_slice %1 {offsets = [6, 128], sizes = [1, 128], strides = [1, 1]} : vector<8x256xf32> to vector<1x128xf32>
    %11 = vector.extract_strided_slice %1 {offsets = [7, 0], sizes = [1, 128], strides = [1, 1]} : vector<8x256xf32> to vector<1x128xf32>
    %12 = tpu.iota {dimensions = array<i32: 1>} : vector<1x128xi32>
    %c32_i32 = arith.constant 32 : i32
    %13 = vector.broadcast %c32_i32 : i32 to vector<1x128xi32>
    %14 = arith.cmpi slt, %12, %13 : vector<1x128xi32>
    %c8_i32 = arith.constant 8 : i32
    %15 = vector.broadcast %c8_i32 : i32 to vector<1x128xi32>
    %16 = arith.cmpi slt, %12, %15 : vector<1x128xi32>
    %c0_3 = arith.constant 0 : index
    %c0_4 = arith.constant 0 : index
    %17 = vector.load %arg2[%c0_3, %c0_4] : memref<16x128xf32, #tpu.memory_space<vmem>>, vector<16x128xf32>
    %cst = arith.constant dense<0.000000e+00> : vector<8x128xf32>
    %18 = tpu.matmul %0, %17, %cst {dimension_numbers = #tpu.dot_dimension_numbers<[1], [0], [0], [1], [0, 0, 1, 1], [], []>} : vector<8x16xf32>, vector<16x128xf32>, vector<8x128xf32> -> vector<8x128xf32>
    %19 = vector.broadcast %2 : vector<1x128xf32> to vector<8x128xf32>
    %20 = arith.addf %18, %19 : vector<8x128xf32>
    %cst_5 = arith.constant dense<0.000000e+00> : vector<8xf32>
    %21 = vector.multi_reduction <add>, %20, %cst_5 [1] : vector<8x128xf32> to vector<8xf32>
    %22 = vector.shape_cast %21 : vector<8xf32> to vector<8x1xf32>
    %cst_6 = arith.constant 3.125000e-02 : f32
    %23 = vector.broadcast %cst_6 : f32 to vector<8x1xf32>
    %24 = arith.mulf %22, %23 : vector<8x1xf32>
    %25 = vector.broadcast %24 : vector<8x1xf32> to vector<8x128xf32>
    %26 = arith.subf %20, %25 : vector<8x128xf32>
    %cst_7 = arith.constant 0.000000e+00 : f32
    %27 = vector.shape_cast %14 : vector<1x128xi1> to vector<1x128xi1>
    %28 = vector.broadcast %27 : vector<1x128xi1> to vector<8x128xi1>
    %29 = vector.broadcast %cst_7 : f32 to vector<8x128xf32>
    %30 = arith.select %28, %26, %29 : vector<8x128xi1>, vector<8x128xf32>
    %31 = arith.mulf %30, %30 : vector<8x128xf32>
    %cst_8 = arith.constant dense<0.000000e+00> : vector<8xf32>
    %32 = vector.multi_reduction <add>, %31, %cst_8 [1] : vector<8x128xf32> to vector<8xf32>
    %33 = vector.shape_cast %32 : vector<8xf32> to vector<8x1xf32>
    %cst_9 = arith.constant 3.125000e-02 : f32
    %34 = vector.broadcast %cst_9 : f32 to vector<8x1xf32>
    %35 = arith.mulf %33, %34 : vector<8x1xf32>
    %cst_10 = arith.constant 9.99999974E-6 : f32
    %36 = vector.broadcast %cst_10 : f32 to vector<8x1xf32>
    %37 = arith.addf %35, %36 : vector<8x1xf32>
    %38 = math.rsqrt %37 : vector<8x1xf32>
    %39 = vector.broadcast %38 : vector<8x1xf32> to vector<8x128xf32>
    %40 = arith.mulf %30, %39 : vector<8x128xf32>
    %41 = vector.broadcast %3 : vector<1x128xf32> to vector<8x128xf32>
    %42 = arith.mulf %40, %41 : vector<8x128xf32>
    %43 = vector.broadcast %4 : vector<1x128xf32> to vector<8x128xf32>
    %44 = arith.addf %42, %43 : vector<8x128xf32>
    %cst_11 = arith.constant 0.000000e+00 : f32
    %45 = vector.broadcast %cst_11 : f32 to vector<8x128xf32>
    %46 = arith.maximumf %44, %45 : vector<8x128xf32>
    %c0_12 = arith.constant 0 : index
    %c0_13 = arith.constant 0 : index
    %47 = vector.load %arg3[%c0_12, %c0_13] : memref<128x384xf32, #tpu.memory_space<vmem>>, vector<128x128xf32>
    %cst_14 = arith.constant dense<0.000000e+00> : vector<8x128xf32>
    %48 = tpu.matmul %46, %47, %cst_14 {dimension_numbers = #tpu.dot_dimension_numbers<[1], [0], [0], [1], [0, 0, 1, 1], [], []>} : vector<8x128xf32>, vector<128x128xf32>, vector<8x128xf32> -> vector<8x128xf32>
    %49 = vector.broadcast %5 : vector<1x128xf32> to vector<8x128xf32>
    %50 = arith.addf %48, %49 : vector<8x128xf32>
    %cst_15 = arith.constant 0.000000e+00 : f32
    %51 = vector.broadcast %cst_15 : f32 to vector<8x128xf32>
    %52 = arith.maximumf %50, %51 : vector<8x128xf32>
    %c0_16 = arith.constant 0 : index
    %c128 = arith.constant 128 : index
    %53 = vector.load %arg3[%c0_16, %c128] : memref<128x384xf32, #tpu.memory_space<vmem>>, vector<128x256xf32>
    %cst_17 = arith.constant dense<0.000000e+00> : vector<8x256xf32>
    %54 = tpu.matmul %52, %53, %cst_17 {dimension_numbers = #tpu.dot_dimension_numbers<[1], [0], [0], [1], [0, 0, 1, 1], [], []>} : vector<8x128xf32>, vector<128x256xf32>, vector<8x256xf32> -> vector<8x256xf32>
    %55 = vector.broadcast %6 : vector<1x256xf32> to vector<8x256xf32>
    %56 = arith.addf %54, %55 : vector<8x256xf32>
    %57 = vector.extract_strided_slice %56 {offsets = [0, 0], sizes = [8, 128], strides = [1, 1]} : vector<8x256xf32> to vector<8x128xf32>
    %cst_18 = arith.constant dense<0.000000e+00> : vector<8xf32>
    %58 = vector.multi_reduction <add>, %57, %cst_18 [1] : vector<8x128xf32> to vector<8xf32>
    %59 = vector.shape_cast %58 : vector<8xf32> to vector<8x1xf32>
    %cst_19 = arith.constant 3.125000e-02 : f32
    %60 = vector.broadcast %cst_19 : f32 to vector<8x1xf32>
    %61 = arith.mulf %59, %60 : vector<8x1xf32>
    %62 = vector.broadcast %61 : vector<8x1xf32> to vector<8x128xf32>
    %63 = arith.subf %57, %62 : vector<8x128xf32>
    %cst_20 = arith.constant 0.000000e+00 : f32
    %64 = vector.shape_cast %14 : vector<1x128xi1> to vector<1x128xi1>
    %65 = vector.broadcast %64 : vector<1x128xi1> to vector<8x128xi1>
    %66 = vector.broadcast %cst_20 : f32 to vector<8x128xf32>
    %67 = arith.select %65, %63, %66 : vector<8x128xi1>, vector<8x128xf32>
    %68 = arith.mulf %67, %67 : vector<8x128xf32>
    %cst_21 = arith.constant dense<0.000000e+00> : vector<8xf32>
    %69 = vector.multi_reduction <add>, %68, %cst_21 [1] : vector<8x128xf32> to vector<8xf32>
    %70 = vector.shape_cast %69 : vector<8xf32> to vector<8x1xf32>
    %cst_22 = arith.constant 3.125000e-02 : f32
    %71 = vector.broadcast %cst_22 : f32 to vector<8x1xf32>
    %72 = arith.mulf %70, %71 : vector<8x1xf32>
    %cst_23 = arith.constant 9.99999974E-6 : f32
    %73 = vector.broadcast %cst_23 : f32 to vector<8x1xf32>
    %74 = arith.addf %72, %73 : vector<8x1xf32>
    %75 = math.rsqrt %74 : vector<8x1xf32>
    %76 = vector.broadcast %75 : vector<8x1xf32> to vector<8x128xf32>
    %77 = arith.mulf %67, %76 : vector<8x128xf32>
    %78 = vector.broadcast %7 : vector<1x128xf32> to vector<8x128xf32>
    %79 = arith.mulf %77, %78 : vector<8x128xf32>
    %80 = vector.broadcast %9 : vector<1x128xf32> to vector<8x128xf32>
    %81 = arith.addf %79, %80 : vector<8x128xf32>
    %cst_24 = arith.constant 0.000000e+00 : f32
    %82 = vector.broadcast %cst_24 : f32 to vector<8x128xf32>
    %83 = arith.maximumf %81, %82 : vector<8x128xf32>
    %84 = vector.extract_strided_slice %56 {offsets = [0, 128], sizes = [8, 128], strides = [1, 1]} : vector<8x256xf32> to vector<8x128xf32>
    %cst_25 = arith.constant dense<0.000000e+00> : vector<8xf32>
    %85 = vector.multi_reduction <add>, %84, %cst_25 [1] : vector<8x128xf32> to vector<8xf32>
    %86 = vector.shape_cast %85 : vector<8xf32> to vector<8x1xf32>
    %cst_26 = arith.constant 3.125000e-02 : f32
    %87 = vector.broadcast %cst_26 : f32 to vector<8x1xf32>
    %88 = arith.mulf %86, %87 : vector<8x1xf32>
    %89 = vector.broadcast %88 : vector<8x1xf32> to vector<8x128xf32>
    %90 = arith.subf %84, %89 : vector<8x128xf32>
    %cst_27 = arith.constant 0.000000e+00 : f32
    %91 = vector.shape_cast %14 : vector<1x128xi1> to vector<1x128xi1>
    %92 = vector.broadcast %91 : vector<1x128xi1> to vector<8x128xi1>
    %93 = vector.broadcast %cst_27 : f32 to vector<8x128xf32>
    %94 = arith.select %92, %90, %93 : vector<8x128xi1>, vector<8x128xf32>
    %95 = arith.mulf %94, %94 : vector<8x128xf32>
    %cst_28 = arith.constant dense<0.000000e+00> : vector<8xf32>
    %96 = vector.multi_reduction <add>, %95, %cst_28 [1] : vector<8x128xf32> to vector<8xf32>
    %97 = vector.shape_cast %96 : vector<8xf32> to vector<8x1xf32>
    %cst_29 = arith.constant 3.125000e-02 : f32
    %98 = vector.broadcast %cst_29 : f32 to vector<8x1xf32>
    %99 = arith.mulf %97, %98 : vector<8x1xf32>
    %cst_30 = arith.constant 9.99999974E-6 : f32
    %100 = vector.broadcast %cst_30 : f32 to vector<8x1xf32>
    %101 = arith.addf %99, %100 : vector<8x1xf32>
    %102 = math.rsqrt %101 : vector<8x1xf32>
    %103 = vector.broadcast %102 : vector<8x1xf32> to vector<8x128xf32>
    %104 = arith.mulf %94, %103 : vector<8x128xf32>
    %105 = vector.broadcast %8 : vector<1x128xf32> to vector<8x128xf32>
    %106 = arith.mulf %104, %105 : vector<8x128xf32>
    %107 = vector.broadcast %10 : vector<1x128xf32> to vector<8x128xf32>
    %108 = arith.addf %106, %107 : vector<8x128xf32>
    %cst_31 = arith.constant 0.000000e+00 : f32
    %109 = vector.broadcast %cst_31 : f32 to vector<8x128xf32>
    %110 = arith.maximumf %108, %109 : vector<8x128xf32>
    %111 = tpu.concatenate %83, %110 in 1 : vector<8x128xf32>, vector<8x128xf32> -> vector<8x256xf32>
    %c0_32 = arith.constant 0 : index
    %c0_33 = arith.constant 0 : index
    %112 = vector.load %arg4[%c0_32, %c0_33] : memref<256x128xf32, #tpu.memory_space<vmem>>, vector<256x128xf32>
    %cst_34 = arith.constant dense<0.000000e+00> : vector<8x128xf32>
    %113 = tpu.matmul %111, %112, %cst_34 {dimension_numbers = #tpu.dot_dimension_numbers<[1], [0], [0], [1], [0, 0, 1, 1], [], []>} : vector<8x256xf32>, vector<256x128xf32>, vector<8x128xf32> -> vector<8x128xf32>
    %114 = vector.broadcast %11 : vector<1x128xf32> to vector<8x128xf32>
    %115 = arith.addf %113, %114 : vector<8x128xf32>
    %cst_35 = arith.constant 9.99999974E-6 : f32
    %116 = vector.broadcast %cst_35 : f32 to vector<8x128xf32>
    %117 = arith.addf %115, %116 : vector<8x128xf32>
    %cst_36 = arith.constant -1.000000e+30 : f32
    %118 = vector.shape_cast %16 : vector<1x128xi1> to vector<1x128xi1>
    %119 = vector.broadcast %118 : vector<1x128xi1> to vector<8x128xi1>
    %120 = vector.broadcast %cst_36 : f32 to vector<8x128xf32>
    %121 = arith.select %119, %117, %120 : vector<8x128xi1>, vector<8x128xf32>
    %cst_37 = arith.constant dense<0xFF800000> : vector<8xf32>
    %122 = vector.multi_reduction <maximumf>, %121, %cst_37 [1] : vector<8x128xf32> to vector<8xf32>
    %123 = vector.shape_cast %122 : vector<8xf32> to vector<8x1xf32>
    %124 = vector.broadcast %123 : vector<8x1xf32> to vector<8x128xf32>
    %125 = arith.subf %121, %124 : vector<8x128xf32>
    %126 = math.exp %125 : vector<8x128xf32>
    %cst_38 = arith.constant dense<0.000000e+00> : vector<8xf32>
    %127 = vector.multi_reduction <add>, %126, %cst_38 [1] : vector<8x128xf32> to vector<8xf32>
    %128 = vector.shape_cast %127 : vector<8xf32> to vector<8x1xf32>
    %129 = math.log %128 : vector<8x1xf32>
    %130 = vector.broadcast %129 : vector<8x1xf32> to vector<8x128xf32>
    %131 = arith.subf %125, %130 : vector<8x128xf32>
    %cst_39 = arith.constant dense<0xFF800000> : vector<8xf32>
    %132 = vector.multi_reduction <maximumf>, %131, %cst_39 [1] : vector<8x128xf32> to vector<8xf32>
    %133 = vector.shape_cast %132 : vector<8xf32> to vector<8x1xf32>
    %134 = vector.broadcast %133 : vector<8x1xf32> to vector<8x128xf32>
    %135 = arith.subf %131, %134 : vector<8x128xf32>
    %cst_40 = arith.constant -1.000000e+10 : f32
    %cst_41 = arith.constant 1.000000e+00 : f32
    %136 = vector.broadcast %cst_40 : f32 to vector<8x128xf32>
    %137 = arith.maximumf %136, %135 : vector<8x128xf32>
    %138 = vector.broadcast %cst_41 : f32 to vector<8x128xf32>
    %139 = arith.minimumf %138, %137 : vector<8x128xf32>
    %140 = math.exp %139 : vector<8x128xf32>
    %cst_42 = arith.constant 9.99999974E-6 : f32
    %141 = vector.broadcast %cst_42 : f32 to vector<8x128xf32>
    %142 = arith.addf %140, %141 : vector<8x128xf32>
    %cst_43 = arith.constant 0.000000e+00 : f32
    %143 = vector.shape_cast %16 : vector<1x128xi1> to vector<1x128xi1>
    %144 = vector.broadcast %143 : vector<1x128xi1> to vector<8x128xi1>
    %145 = vector.broadcast %cst_43 : f32 to vector<8x128xf32>
    %146 = arith.select %144, %142, %145 : vector<8x128xi1>, vector<8x128xf32>
    %cst_44 = arith.constant dense<0.000000e+00> : vector<8xf32>
    %147 = vector.multi_reduction <add>, %146, %cst_44 [1] : vector<8x128xf32> to vector<8xf32>
    %148 = vector.shape_cast %147 : vector<8xf32> to vector<8x1xf32>
    %149 = vector.broadcast %148 : vector<8x1xf32> to vector<8x128xf32>
    %150 = arith.divf %146, %149 : vector<8x128xf32>
    %c8_i32_45 = arith.constant 8 : i32
    %151 = vector.broadcast %c8_i32_45 : i32 to vector<1x128xi32>
    %152 = arith.cmpi eq, %12, %151 : vector<1x128xi32>
    %cst_46 = arith.constant 0.000000e+00 : f32
    %153 = vector.shape_cast %152 : vector<1x128xi1> to vector<1x128xi1>
    %154 = vector.broadcast %153 : vector<1x128xi1> to vector<8x128xi1>
    %155 = vector.broadcast %cst_46 : f32 to vector<8x128xf32>
    %156 = arith.select %154, %115, %155 : vector<8x128xi1>, vector<8x128xf32>
    %157 = vector.shape_cast %16 : vector<1x128xi1> to vector<1x128xi1>
    %158 = vector.broadcast %157 : vector<1x128xi1> to vector<8x128xi1>
    %159 = arith.select %158, %150, %156 : vector<8x128xi1>, vector<8x128xf32>
    %c0_47 = arith.constant 0 : index
    %c0_48 = arith.constant 0 : index
    %160 = vector.load %arg6[%c0_47, %c0_48] : memref<8x128xf32, #tpu.memory_space<vmem>>, vector<8x128xf32>
    tpu.vector_store %arg6[%c0_47, %c0_48], %159 {strides = array<i32>} : memref<8x128xf32, #tpu.memory_space<vmem>>, vector<8x128xf32>,
    return
  }
  func.func @transform_0(%arg0: i32) -> (i32, i32) {
    %c0_i32 = arith.constant 0 : i32
    %c0_i32_0 = arith.constant 0 : i32
    return %arg0, %c0_i32 : i32, i32
  }
  func.func @transform_1(%arg0: i32) -> (i32, i32) {
    %c0_i32 = arith.constant 0 : i32
    %c0_i32_0 = arith.constant 0 : i32
    %c0_i32_1 = arith.constant 0 : i32
    return %c0_i32, %c0_i32_0 : i32, i32
  }
  func.func @transform_2(%arg0: i32) -> (i32, i32) {
    %c0_i32 = arith.constant 0 : i32
    %c0_i32_0 = arith.constant 0 : i32
    %c0_i32_1 = arith.constant 0 : i32
    return %c0_i32, %c0_i32_0 : i32, i32
  }
  func.func @transform_3(%arg0: i32) -> (i32, i32) {
    %c0_i32 = arith.constant 0 : i32
    %c0_i32_0 = arith.constant 0 : i32
    %c0_i32_1 = arith.constant 0 : i32
    return %c0_i32, %c0_i32_0 : i32, i32
  }
  func.func @transform_4(%arg0: i32) -> (i32, i32) {
    %c0_i32 = arith.constant 0 : i32
    %c0_i32_0 = arith.constant 0 : i32
    %c0_i32_1 = arith.constant 0 : i32
    return %c0_i32, %c0_i32_0 : i32, i32
  }
  func.func @transform_5(%arg0: i32) -> (i32, i32) {
    %c0_i32 = arith.constant 0 : i32
    %c0_i32_0 = arith.constant 0 : i32
    return %arg0, %c0_i32 : i32, i32
  }
}

</mosaic_0001>

<llo_original>
// kernel: net_forward.1
$region0: #{net_forward.1}
  #allocation0 [shape = 'u32[]', space=smem, size = 0x4, offset = 0x4, fixed_abs, tag = 'smem constant byte address 0x4 - core index']
  #allocation1 [shape = 'u32[144,128]{1,0:T(1,128)}', space=vmem, size = 0x12000, scoped, tag = 'internal scratch']
  %s0 = inlined_call_operand.hbm [shape: f32[8,16], index: 0, kind: input, shape index: {}]
  %s1 = inlined_call_operand.hbm [shape: f32[16,128], index: 1, kind: input, shape index: {}]
  %s2 = inlined_call_operand.hbm [shape: f32[128,384], index: 2, kind: input, shape index: {}]
  %s3 = inlined_call_operand.hbm [shape: f32[256,128], index: 3, kind: input, shape index: {}]
  %s4 = inlined_call_operand.hbm [shape: f32[8,256], index: 4, kind: input, shape index: {}]
  %s5 = inlined_call_operand.vmem [shape: f32[8,128], index: 5, kind: output, shape index: {}]
  %s6 = sld [smem:[#allocation0]]
  $region50: #{net_forward.1} parent=0
    _
  %s8 = ssub.s32 1, %s6
  %s9 = scalar_select 0, %s8, %s6
  $region1: #{net_forward.1} parent=0
    #allocation2 [shape = 'u8[4096]{0}', space=vmem, size = 0x1000, scoped, tag = 'input window, operand 0, single buffered']
    #allocation3 [shape = 's32[1]{0}', space=sflag, size = 0x4, scoped, tag = 'scoped memory for net_forward.1']
    #allocation4 [shape = 'u8[8192]{0}', space=vmem, size = 0x2000, scoped, tag = 'input window, operand 1, single buffered']
    #allocation5 [shape = 's32[1]{0}', space=sflag, size = 0x4, scoped, tag = 'scoped memory for net_forward.1']
    #allocation6 [shape = 'u8[196608]{0}', space=vmem, size = 0x30000, scoped, tag = 'input window, operand 2, single buffered']
    #allocation7 [shape = 'u8[131072]{0}', space=vmem, size = 0x20000, scoped, tag = 'input window, operand 3, single buffered']
    #allocation8 [shape = 's32[1]{0}', space=sflag, size = 0x4, scoped, tag = 'scoped memory for net_forward.1']
    #allocation9 [shape = 'u8[8192]{0}', space=vmem, size = 0x2000, scoped, tag = 'input window, operand 4, single buffered']
    %10 = vsyncpa [#allocation3], 0
    %11 = vsyncpa [#allocation5], 0
    %12 = vsyncpa [#allocation8], 0
    // Predicated region
    $region2: #{net_forward.1} parent=1 // pred_check
      _
    $region3: #{net_forward.1} parent=1 // pred_check_branch
      %14 = sbr.rel (0) target = $region5
    $region4: #{net_forward.1} parent=1 // pred_region
      %s16 = ssub.s32 128, 128
      %17 = vsyncadd [#allocation3], %s16
      %s19 = sshll.u32 [#allocation2], 4
      %s20 = int_to_ptr.vmem [resolvable:$true] %s19
      %22 = dma.hbm_to_vmem [thread:$0]  %s0, 128, %s20, [#allocation3]
    $region5: #{net_forward.1} parent=1 // pred_fallthru
      _
    // Predicated region
    $region6: #{net_forward.1} parent=1 // pred_check
      _
    $region7: #{net_forward.1} parent=1 // pred_check_branch
      %24 = sbr.rel (0) target = $region9
    $region8: #{net_forward.1} parent=1 // pred_region
      %s26 = ssub.s32 256, 256
      %27 = vsyncadd [#allocation5], %s26
      %s28 = sshll.u32 [#allocation4], 4
      %s29 = int_to_ptr.vmem [resolvable:$true] %s28
      %34 = dma.hbm_to_vmem [thread:$0]  %s1, 256, %s29, [#allocation5], 128, 128, 8
    $region9: #{net_forward.1} parent=1 // pred_fallthru
      _
    // Predicated region
    $region10: #{net_forward.1} parent=1 // pred_check
      _
    $region11: #{net_forward.1} parent=1 // pred_check_branch
      %36 = sbr.rel (0) target = $region13
    $region12: #{net_forward.1} parent=1 // pred_region
      %s38 = ssub.s32 6144, 6144
      %39 = vsyncadd [#allocation5], %s38
      %s40 = sshll.u32 [#allocation6], 4
      %s41 = int_to_ptr.vmem [resolvable:$true] %s40
      %46 = dma.hbm_to_vmem [thread:$0]  %s2, 6144, %s41, [#allocation5], 384, 384, 24
    $region13: #{net_forward.1} parent=1 // pred_fallthru
      _
    // Predicated region
    $region14: #{net_forward.1} parent=1 // pred_check
      _
    $region15: #{net_forward.1} parent=1 // pred_check_branch
      %48 = sbr.rel (0) target = $region17
    $region16: #{net_forward.1} parent=1 // pred_region
      %s50 = ssub.s32 4096, 4096
      %51 = vsyncadd [#allocation8], %s50
      %s52 = sshll.u32 [#allocation7], 4
      %s53 = int_to_ptr.vmem [resolvable:$true] %s52
      %58 = dma.hbm_to_vmem [thread:$0]  %s3, 4096, %s53, [#allocation8], 128, 128, 8
    $region17: #{net_forward.1} parent=1 // pred_fallthru
      _
    // Predicated region
    $region18: #{net_forward.1} parent=1 // pred_check
      _
    $region19: #{net_forward.1} parent=1 // pred_check_branch
      %60 = sbr.rel (0) target = $region21
    $region20: #{net_forward.1} parent=1 // pred_region
      %s62 = ssub.s32 256, 256
      %63 = vsyncadd [#allocation8], %s62
      %s65 = sshll.u32 [#allocation9], 4
      %s66 = int_to_ptr.vmem [resolvable:$true] %s65
      %68 = dma.hbm_to_vmem [thread:$0]  %s4, 256, %s66, [#allocation8]
    $region21: #{net_forward.1} parent=1 // pred_fallthru
      _
    // Predicated region
    $region22: #{net_forward.1} parent=1 // pred_check
      _
    $region23: #{net_forward.1} parent=1 // pred_check_branch
      %70 = sbr.rel (0) target = $region25
    $region24: #{net_forward.1} parent=1 // pred_region
      %71 = dma.done [#allocation3], 128
    $region25: #{net_forward.1} parent=1 // pred_fallthru
      _
    // Predicated region
    $region26: #{net_forward.1} parent=1 // pred_check
      _
    $region27: #{net_forward.1} parent=1 // pred_check_branch
      %73 = sbr.rel (0) target = $region29
    $region28: #{net_forward.1} parent=1 // pred_region
      %74 = dma.done [#allocation5], 256
    $region29: #{net_forward.1} parent=1 // pred_fallthru
      _
    // Predicated region
    $region30: #{net_forward.1} parent=1 // pred_check
      _
    $region31: #{net_forward.1} parent=1 // pred_check_branch
      %76 = sbr.rel (0) target = $region33
    $region32: #{net_forward.1} parent=1 // pred_region
      %77 = dma.done [#allocation5], 6144
    $region33: #{net_forward.1} parent=1 // pred_fallthru
      _
    // Predicated region
    $region34: #{net_forward.1} parent=1 // pred_check
      _
    $region35: #{net_forward.1} parent=1 // pred_check_branch
      %79 = sbr.rel (0) target = $region37
    $region36: #{net_forward.1} parent=1 // pred_region
      %80 = dma.done [#allocation8], 4096
    $region37: #{net_forward.1} parent=1 // pred_fallthru
      _
    // Predicated region
    $region38: #{net_forward.1} parent=1 // pred_check
      _
    $region39: #{net_forward.1} parent=1 // pred_check_branch
      %82 = sbr.rel (0) target = $region41
    $region40: #{net_forward.1} parent=1 // pred_region
      %83 = dma.done [#allocation8], 256
    $region41: #{net_forward.1} parent=1 // pred_fallthru
      _
    %v84 = vld [vmem:[#allocation2] sm:$0xff]
    %v85 = vld [vmem:[#allocation9] sm:$0xff]
    %v86 = vld [vmem:[#allocation9 + $0x8] sm:$0xff]
    %v87 = vlaneseq
    %v88 = vand.u32 %v87, 127
    %vm89 = vcmp.lt.s32.totalorder %v88, 32
    %vm90 = vcmp.lt.s32.totalorder %v88, 8
    %v91 = vld [vmem:[#allocation4] sm:$0xff]
    %v92 = vld [vmem:[#allocation4 + $0x8] sm:$0xff]
    %v93 = vlaneseq
    %v94 = vshrl.u32 %v93, 7
    %v95 = vsub.s32 0, %v94
    %v96 = vrot.slane %v85, %v95
    %vm97 = vcmask 130048
    %v99 = vsel %vm97, %v84, 0
    %101 = vmatprep.subr.mxu0 0.0
    %102 = vmatpush1.msra.mxu0 %v91
    %103 = vmatprep.subr.mxu0 0.0
    %104 = vmatpush1.msra.mxu0 %v92
    %105 = vmatprep.subr.mxu0 0.0
    %106 = vmatpush1.msra.mxu0 0.0
    %107 = vmatprep.subr.mxu0 0.0
    %108 = vmatpush1.msra.mxu0 0.0
    %109 = vmatprep.subr.mxu0 0.0
    %110 = vmatpush1.msra.mxu0 0.0
    %111 = vmatprep.subr.mxu0 0.0
    %112 = vmatpush1.msra.mxu0 0.0
    %113 = vmatprep.subr.mxu0 0.0
    %114 = vmatpush1.msra.mxu0 0.0
    %115 = vmatprep.subr.mxu0 0.0
    %116 = vmatpush1.msra.mxu0 0.0
    %117 = vmatprep.subr.mxu0 0.0
    %118 = vmatpush1.msra.mxu0 0.0
    %119 = vmatprep.subr.mxu0 0.0
    %120 = vmatpush1.msra.mxu0 0.0
    %121 = vmatprep.subr.mxu0 0.0
    %122 = vmatpush1.msra.mxu0 0.0
    %123 = vmatprep.subr.mxu0 0.0
    %124 = vmatpush1.msra.mxu0 0.0
    %125 = vmatprep.subr.mxu0 0.0
    %126 = vmatpush1.msra.mxu0 0.0
    %127 = vmatprep.subr.mxu0 0.0
    %128 = vmatpush1.msra.mxu0 0.0
    %129 = vmatprep.subr.mxu0 0.0
    %130 = vmatpush1.msra.mxu0 0.0
    %131 = vmatprep.subr.mxu0 0.0
    %132 = vmatpush1.msra.mxu0 0.0
    %133 = vmatprep.subr.mxu0 0.0
    %134 = vmatpush1.msra.mxu0 0.0
    %135 = vmatprep.subr.mxu0 0.0
    %136 = vmatpush1.msra.mxu0 0.0
    %137 = vmatprep.subr.mxu0 0.0
    %138 = vmatpush1.msra.mxu0 0.0
    %139 = vmatprep.subr.mxu0 0.0
    %140 = vmatpush1.msra.mxu0 0.0
    %141 = vmatprep.subr.mxu0 0.0
    %142 = vmatpush1.msra.mxu0 0.0
    %143 = vmatprep.subr.mxu0 0.0
    %144 = vmatpush1.msra.mxu0 0.0
    %145 = vmatprep.subr.mxu0 0.0
    %146 = vmatpush1.msra.mxu0 0.0
    %147 = vmatprep.subr.mxu0 0.0
    %148 = vmatpush1.msra.mxu0 0.0
    %149 = vmatprep.subr.mxu0 0.0
    %150 = vmatpush1.msra.mxu0 0.0
    %151 = vmatprep.subr.mxu0 0.0
    %152 = vmatpush1.msra.mxu0 0.0
    %153 = vmatprep.subr.mxu0 0.0
    %154 = vmatpush1.msra.mxu0 0.0
    %155 = vmatprep.subr.mxu0 0.0
    %156 = vmatpush1.msra.mxu0 0.0
    %157 = vmatprep.subr.mxu0 0.0
    %158 = vmatpush1.msra.mxu0 0.0
    %159 = vmatprep.subr.mxu0 0.0
    %160 = vmatpush1.msra.mxu0 0.0
    %161 = vmatprep.subr.mxu0 0.0
    %162 = vmatpush1.msra.mxu0 0.0
    %163 = vmatprep.subr.mxu0 0.0
    %164 = vmatpush1.msra.mxu0 0.0
    %165 = vmatprep.mubr.f32.mxu0 0.0
    %166 = vmatmul.mubr.f32.gmra.mrb[0].mxu0 %v99
    %v167 = vpop.f32.mrb[0].mxu0
    %v168 = vadd.f32 %v96, %v167
    %v169 = vpop.f32.mrb[0].mxu0
    %170 = vdwg.mxu0
    %171 = vadd.xlane.f32.xlu0 %v168
    %v172 = vpop.xlane.xlu0 %171
    %v173 = vmul.f32 %v172, 0.03125
    %v174 = vsub.f32 %v168, %v173
    %v175 = vsel %vm89, 1, 0
    %vm176 = vcmp.eq.s32.totalorder %v175, 1
    %v177 = vsel %vm176, %v174, 0.0
    %v178 = vmul.f32 %v177, %v177
    %179 = vadd.xlane.f32.xlu0 %v178
    %v180 = vpop.xlane.xlu0 %179
    %v181 = vmul.f32 %v180, 0.03125
    %v182 = vadd.f32 %v181, 1e-05
    %v183 = vrsqrt.pop %v182
    %v184 = vmul.f32 %v177, %v183
    %v185 = vlaneseq
    %v186 = vshrl.u32 %v185, 7
    %v187 = vsub.s32 1, %v186
    %v188 = vrot.slane %v85, %v187
    %v189 = vmul.f32 %v184, %v188
    %v190 = vlaneseq
    %v191 = vshrl.u32 %v190, 7
    %v192 = vsub.s32 2, %v191
    %v193 = vrot.slane %v85, %v192
    %v194 = vadd.f32 %v189, %v193
    %v195 = vmax.f32 %v194, 0.0
    %v196 = vld [vmem:[#allocation6] sm:$0xff]
    %v197 = vld [vmem:[#allocation6 + $0x18] sm:$0xff]
    %v198 = vld [vmem:[#allocation6 + $0x30] sm:$0xff]
    %v199 = vld [vmem:[#allocation6 + $0x48] sm:$0xff]
    %v200 = vld [vmem:[#allocation6 + $0x60] sm:$0xff]
    %v201 = vld [vmem:[#allocation6 + $0x78] sm:$0xff]
    %v202 = vld [vmem:[#allocation6 + $0x90] sm:$0xff]
    %v203 = vld [vmem:[#allocation6 + $0xa8] sm:$0xff]
    %v204 = vld [vmem:[#allocation6 + $0xc0] sm:$0xff]
    %v205 = vld [vmem:[#allocation6 + $0xd8] sm:$0xff]
    %v206 = vld [vmem:[#allocation6 + $0xf0] sm:$0xff]
    %v207 = vld [vmem:[#allocation6 + $0x108] sm:$0xff]
    %v208 = vld [vmem:[#allocation6 + $0x120] sm:$0xff]
    %v209 = vld [vmem:[#allocation6 + $0x138] sm:$0xff]
    %v210 = vld [vmem:[#allocation6 + $0x150] sm:$0xff]
    %v211 = vld [vmem:[#allocation6 + $0x168] sm:$0xff]
    %v212 = vlaneseq
    %v213 = vshrl.u32 %v212, 7
    %v214 = vsub.s32 3, %v213
    %v215 = vrot.slane %v85, %v214
    %216 = vmatprep.subr.mxu0 0.0
    %217 = vmatpush1.msra.mxu0 %v196
    %218 = vmatprep.subr.mxu0 0.0
    %219 = vmatpush1.msra.mxu0 %v197
    %220 = vmatprep.subr.mxu0 0.0
    %221 = vmatpush1.msra.mxu0 %v198
    %222 = vmatprep.subr.mxu0 0.0
    %223 = vmatpush1.msra.mxu0 %v199
    %224 = vmatprep.subr.mxu0 0.0
    %225 = vmatpush1.msra.mxu0 %v200
    %226 = vmatprep.subr.mxu0 0.0
    %227 = vmatpush1.msra.mxu0 %v201
    %228 = vmatprep.subr.mxu0 0.0
    %229 = vmatpush1.msra.mxu0 %v202
    %230 = vmatprep.subr.mxu0 0.0
    %231 = vmatpush1.msra.mxu0 %v203
    %232 = vmatprep.subr.mxu0 0.0
    %233 = vmatpush1.msra.mxu0 %v204
    %234 = vmatprep.subr.mxu0 0.0
    %235 = vmatpush1.msra.mxu0 %v205
    %236 = vmatprep.subr.mxu0 0.0
    %237 = vmatpush1.msra.mxu0 %v206
    %238 = vmatprep.subr.mxu0 0.0
    %239 = vmatpush1.msra.mxu0 %v207
    %240 = vmatprep.subr.mxu0 0.0
    %241 = vmatpush1.msra.mxu0 %v208
    %242 = vmatprep.subr.mxu0 0.0
    %243 = vmatpush1.msra.mxu0 %v209
    %244 = vmatprep.subr.mxu0 0.0
    %245 = vmatpush1.msra.mxu0 %v210
    %246 = vmatprep.subr.mxu0 0.0
    %247 = vmatpush1.msra.mxu0 %v211
    %248 = vmatprep.subr.mxu0 0.0
    %249 = vmatpush1.msra.mxu0 0.0
    %250 = vmatprep.subr.mxu0 0.0
    %251 = vmatpush1.msra.mxu0 0.0
    %252 = vmatprep.subr.mxu0 0.0
    %253 = vmatpush1.msra.mxu0 0.0
    %254 = vmatprep.subr.mxu0 0.0
    %255 = vmatpush1.msra.mxu0 0.0
    %256 = vmatprep.subr.mxu0 0.0
    %257 = vmatpush1.msra.mxu0 0.0
    %258 = vmatprep.subr.mxu0 0.0
    %259 = vmatpush1.msra.mxu0 0.0
    %260 = vmatprep.subr.mxu0 0.0
    %261 = vmatpush1.msra.mxu0 0.0
    %262 = vmatprep.subr.mxu0 0.0
    %263 = vmatpush1.msra.mxu0 0.0
    %264 = vmatprep.subr.mxu0 0.0
    %265 = vmatpush1.msra.mxu0 0.0
    %266 = vmatprep.subr.mxu0 0.0
    %267 = vmatpush1.msra.mxu0 0.0
    %268 = vmatprep.subr.mxu0 0.0
    %269 = vmatpush1.msra.mxu0 0.0
    %270 = vmatprep.subr.mxu0 0.0
    %271 = vmatpush1.msra.mxu0 0.0
    %272 = vmatprep.subr.mxu0 0.0
    %273 = vmatpush1.msra.mxu0 0.0
    %274 = vmatprep.subr.mxu0 0.0
    %275 = vmatpush1.msra.mxu0 0.0
    %276 = vmatprep.subr.mxu0 0.0
    %277 = vmatpush1.msra.mxu0 0.0
    %278 = vmatprep.subr.mxu0 0.0
    %279 = vmatpush1.msra.mxu0 0.0
    %280 = vmatprep.mubr.f32.mxu0 0.0
    %281 = vmatmul.mubr.f32.gmra.mrb[0].mxu0 %v195
    %v282 = vpop.f32.mrb[0].mxu0
    %v283 = vadd.f32 %v215, %v282
    %v284 = vpop.f32.mrb[0].mxu0
    %285 = vdwg.mxu0
    %v286 = vmax.f32 %v283, 0.0
    %v287 = vld [vmem:[#allocation6 + $0x8] sm:$0xff]
    %v288 = vld [vmem:[#allocation6 + $0x10] sm:$0xff]
    %v289 = vld [vmem:[#allocation6 + $0x20] sm:$0xff]
    %v290 = vld [vmem:[#allocation6 + $0x28] sm:$0xff]
    %v291 = vld [vmem:[#allocation6 + $0x38] sm:$0xff]
    %v292 = vld [vmem:[#allocation6 + $0x40] sm:$0xff]
    %v293 = vld [vmem:[#allocation6 + $0x50] sm:$0xff]
    %v294 = vld [vmem:[#allocation6 + $0x58] sm:$0xff]
    %v295 = vld [vmem:[#allocation6 + $0x68] sm:$0xff]
    %v296 = vld [vmem:[#allocation6 + $0x70] sm:$0xff]
    %v297 = vld [vmem:[#allocation6 + $0x80] sm:$0xff]
    %v298 = vld [vmem:[#allocation6 + $0x88] sm:$0xff]
    %v299 = vld [vmem:[#allocation6 + $0x98] sm:$0xff]
    %v300 = vld [vmem:[#allocation6 + $0xa0] sm:$0xff]
    %v301 = vld [vmem:[#allocation6 + $0xb0] sm:$0xff]
    %v302 = vld [vmem:[#allocation6 + $0xb8] sm:$0xff]
    %v303 = vld [vmem:[#allocation6 + $0xc8] sm:$0xff]
    %v304 = vld [vmem:[#allocation6 + $0xd0] sm:$0xff]
    %v305 = vld [vmem:[#allocation6 + $0xe0] sm:$0xff]
    %v306 = vld [vmem:[#allocation6 + $0xe8] sm:$0xff]
    %v307 = vld [vmem:[#allocation6 + $0xf8] sm:$0xff]
    %v308 = vld [vmem:[#allocation6 + $0x100] sm:$0xff]
    %v309 = vld [vmem:[#allocation6 + $0x110] sm:$0xff]
    %v310 = vld [vmem:[#allocation6 + $0x118] sm:$0xff]
    %v311 = vld [vmem:[#allocation6 + $0x128] sm:$0xff]
    %v312 = vld [vmem:[#allocation6 + $0x130] sm:$0xff]
    %v313 = vld [vmem:[#allocation6 + $0x140] sm:$0xff]
    %v314 = vld [vmem:[#allocation6 + $0x148] sm:$0xff]
    %v315 = vld [vmem:[#allocation6 + $0x158] sm:$0xff]
    %v316 = vld [vmem:[#allocation6 + $0x160] sm:$0xff]
    %v317 = vld [vmem:[#allocation6 + $0x170] sm:$0xff]
    %v318 = vld [vmem:[#allocation6 + $0x178] sm:$0xff]
    %v319 = vlaneseq
    %v320 = vshrl.u32 %v319, 7
    %v321 = vsub.s32 4, %v320
    %v322 = vrot.slane %v85, %v321
    %v323 = vlaneseq
    %v324 = vshrl.u32 %v323, 7
    %v325 = vsub.s32 4, %v324
    %v326 = vrot.slane %v86, %v325
    %327 = vmatprep.subr.mxu0 %v288
    %328 = vmatpush1.msra.mxu0 %v287
    %329 = vmatprep.subr.mxu0 %v290
    %330 = vmatpush1.msra.mxu0 %v289
    %331 = vmatprep.subr.mxu0 %v292
    %332 = vmatpush1.msra.mxu0 %v291
    %333 = vmatprep.subr.mxu0 %v294
    %334 = vmatpush1.msra.mxu0 %v293
    %335 = vmatprep.subr.mxu0 %v296
    %336 = vmatpush1.msra.mxu0 %v295
    %337 = vmatprep.subr.mxu0 %v298
    %338 = vmatpush1.msra.mxu0 %v297
    %339 = vmatprep.subr.mxu0 %v300
    %340 = vmatpush1.msra.mxu0 %v299
    %341 = vmatprep.subr.mxu0 %v302
    %342 = vmatpush1.msra.mxu0 %v301
    %343 = vmatprep.subr.mxu0 %v304
    %344 = vmatpush1.msra.mxu0 %v303
    %345 = vmatprep.subr.mxu0 %v306
    %346 = vmatpush1.msra.mxu0 %v305
    %347 = vmatprep.subr.mxu0 %v308
    %348 = vmatpush1.msra.mxu0 %v307
    %349 = vmatprep.subr.mxu0 %v310
    %350 = vmatpush1.msra.mxu0 %v309
    %351 = vmatprep.subr.mxu0 %v312
    %352 = vmatpush1.msra.mxu0 %v311
    %353 = vmatprep.subr.mxu0 %v314
    %354 = vmatpush1.msra.mxu0 %v313
    %355 = vmatprep.subr.mxu0 %v316
    %356 = vmatpush1.msra.mxu0 %v315
    %357 = vmatprep.subr.mxu0 %v318
    %358 = vmatpush1.msra.mxu0 %v317
    %359 = vmatprep.subr.mxu0 0.0
    %360 = vmatpush1.msra.mxu0 0.0
    %361 = vmatprep.subr.mxu0 0.0
    %362 = vmatpush1.msra.mxu0 0.0
    %363 = vmatprep.subr.mxu0 0.0
    %364 = vmatpush1.msra.mxu0 0.0
    %365 = vmatprep.subr.mxu0 0.0
    %366 = vmatpush1.msra.mxu0 0.0
    %367 = vmatprep.subr.mxu0 0.0
    %368 = vmatpush1.msra.mxu0 0.0
    %369 = vmatprep.subr.mxu0 0.0
    %370 = vmatpush1.msra.mxu0 0.0
    %371 = vmatprep.subr.mxu0 0.0
    %372 = vmatpush1.msra.mxu0 0.0
    %373 = vmatprep.subr.mxu0 0.0
    %374 = vmatpush1.msra.mxu0 0.0
    %375 = vmatprep.subr.mxu0 0.0
    %376 = vmatpush1.msra.mxu0 0.0
    %377 = vmatprep.subr.mxu0 0.0
    %378 = vmatpush1.msra.mxu0 0.0
    %379 = vmatprep.subr.mxu0 0.0
    %380 = vmatpush1.msra.mxu0 0.0
    %381 = vmatprep.subr.mxu0 0.0
    %382 = vmatpush1.msra.mxu0 0.0
    %383 = vmatprep.subr.mxu0 0.0
    %384 = vmatpush1.msra.mxu0 0.0
    %385 = vmatprep.subr.mxu0 0.0
    %386 = vmatpush1.msra.mxu0 0.0
    %387 = vmatprep.subr.mxu0 0.0
    %388 = vmatpush1.msra.mxu0 0.0
    %389 = vmatprep.subr.mxu0 0.0
    %390 = vmatpush1.msra.mxu0 0.0
    %391 = vmatprep.mubr.f32.mxu0 0.0
    %392 = vmatmul.mubr.f32.gmra.mrb[0].mxu0 %v286
    %v393 = vpop.f32.mrb[0].mxu0
    %v394 = vadd.f32 %v322, %v393
    %v395 = vpop.f32.mrb[0].mxu0
    %v396 = vadd.f32 %v326, %v395
    %397 = vdwg.mxu0
    %398 = vadd.xlane.f32.xlu0 %v394
    %v399 = vpop.xlane.xlu0 %398
    %v400 = vmul.f32 %v399, 0.03125
    %v401 = vsub.f32 %v394, %v400
    %v402 = vsel %vm176, %v401, 0.0
    %v403 = vmul.f32 %v402, %v402
    %404 = vadd.xlane.f32.xlu0 %v403
    %v405 = vpop.xlane.xlu0 %404
    %v406 = vmul.f32 %v405, 0.03125
    %v407 = vadd.f32 %v406, 1e-05
    %v408 = vrsqrt.pop %v407
    %v409 = vmul.f32 %v402, %v408
    %v410 = vlaneseq
    %v411 = vshrl.u32 %v410, 7
    %v412 = vsub.s32 5, %v411
    %v413 = vrot.slane %v85, %v412
    %v414 = vmul.f32 %v409, %v413
    %v415 = vlaneseq
    %v416 = vshrl.u32 %v415, 7
    %v417 = vsub.s32 6, %v416
    %v418 = vrot.slane %v85, %v417
    %v419 = vadd.f32 %v414, %v418
    %v420 = vmax.f32 %v419, 0.0
    %421 = vadd.xlane.f32.xlu0 %v396
    %v422 = vpop.xlane.xlu0 %421
    %v423 = vmul.f32 %v422, 0.03125
    %v424 = vsub.f32 %v396, %v423
    %v425 = vsel %vm176, %v424, 0.0
    %v426 = vmul.f32 %v425, %v425
    %427 = vadd.xlane.f32.xlu0 %v426
    %v428 = vpop.xlane.xlu0 %427
    %v429 = vmul.f32 %v428, 0.03125
    %v430 = vadd.f32 %v429, 1e-05
    %v431 = vrsqrt.pop %v430
    %v432 = vmul.f32 %v425, %v431
    %v433 = vlaneseq
    %v434 = vshrl.u32 %v433, 7
    %v435 = vsub.s32 5, %v434
    %v436 = vrot.slane %v86, %v435
    %v437 = vmul.f32 %v432, %v436
    %v438 = vlaneseq
    %v439 = vshrl.u32 %v438, 7
    %v440 = vsub.s32 6, %v439
    %v441 = vrot.slane %v86, %v440
    %v442 = vadd.f32 %v437, %v441
    %v443 = vmax.f32 %v442, 0.0
    %v444 = vld [vmem:[#allocation7] sm:$0xff]
    %v445 = vld [vmem:[#allocation7 + $0x8] sm:$0xff]
    %v446 = vld [vmem:[#allocation7 + $0x10] sm:$0xff]
    %v447 = vld [vmem:[#allocation7 + $0x18] sm:$0xff]
    %v448 = vld [vmem:[#allocation7 + $0x20] sm:$0xff]
    %v449 = vld [vmem:[#allocation7 + $0x28] sm:$0xff]
    %v450 = vld [vmem:[#allocation7 + $0x30] sm:$0xff]
    %v451 = vld [vmem:[#allocation7 + $0x38] sm:$0xff]
    %v452 = vld [vmem:[#allocation7 + $0x40] sm:$0xff]
    %v453 = vld [vmem:[#allocation7 + $0x48] sm:$0xff]
    %v454 = vld [vmem:[#allocation7 + $0x50] sm:$0xff]
    %v455 = vld [vmem:[#allocation7 + $0x58] sm:$0xff]
    %v456 = vld [vmem:[#allocation7 + $0x60] sm:$0xff]
    %v457 = vld [vmem:[#allocation7 + $0x68] sm:$0xff]
    %v458 = vld [vmem:[#allocation7 + $0x70] sm:$0xff]
    %v459 = vld [vmem:[#allocation7 + $0x78] sm:$0xff]
    %v460 = vld [vmem:[#allocation7 + $0x80] sm:$0xff]
    %v461 = vld [vmem:[#allocation7 + $0x88] sm:$0xff]
    %v462 = vld [vmem:[#allocation7 + $0x90] sm:$0xff]
    %v463 = vld [vmem:[#allocation7 + $0x98] sm:$0xff]
    %v464 = vld [vmem:[#allocation7 + $0xa0] sm:$0xff]
    %v465 = vld [vmem:[#allocation7 + $0xa8] sm:$0xff]
    %v466 = vld [vmem:[#allocation7 + $0xb0] sm:$0xff]
    %v467 = vld [vmem:[#allocation7 + $0xb8] sm:$0xff]
    %v468 = vld [vmem:[#allocation7 + $0xc0] sm:$0xff]
    %v469 = vld [vmem:[#allocation7 + $0xc8] sm:$0xff]
    %v470 = vld [vmem:[#allocation7 + $0xd0] sm:$0xff]
    %v471 = vld [vmem:[#allocation7 + $0xd8] sm:$0xff]
    %v472 = vld [vmem:[#allocation7 + $0xe0] sm:$0xff]
    %v473 = vld [vmem:[#allocation7 + $0xe8] sm:$0xff]
    %v474 = vld [vmem:[#allocation7 + $0xf0] sm:$0xff]
    %v475 = vld [vmem:[#allocation7 + $0xf8] sm:$0xff]
    %v476 = vlaneseq
    %v477 = vshrl.u32 %v476, 7
    %v478 = vsub.s32 7, %v477
    %v479 = vrot.slane %v85, %v478
    %480 = vmatprep.subr.mxu0 0.0
    %481 = vmatpush1.msra.mxu0 %v444
    %482 = vmatprep.subr.mxu0 0.0
    %483 = vmatpush1.msra.mxu0 %v445
    %484 = vmatprep.subr.mxu0 0.0
    %485 = vmatpush1.msra.mxu0 %v446
    %486 = vmatprep.subr.mxu0 0.0
    %487 = vmatpush1.msra.mxu0 %v447
    %488 = vmatprep.subr.mxu0 0.0
    %489 = vmatpush1.msra.mxu0 %v448
    %490 = vmatprep.subr.mxu0 0.0
    %491 = vmatpush1.msra.mxu0 %v449
    %492 = vmatprep.subr.mxu0 0.0
    %493 = vmatpush1.msra.mxu0 %v450
    %494 = vmatprep.subr.mxu0 0.0
    %495 = vmatpush1.msra.mxu0 %v451
    %496 = vmatprep.subr.mxu0 0.0
    %497 = vmatpush1.msra.mxu0 %v452
    %498 = vmatprep.subr.mxu0 0.0
    %499 = vmatpush1.msra.mxu0 %v453
    %500 = vmatprep.subr.mxu0 0.0
    %501 = vmatpush1.msra.mxu0 %v454
    %502 = vmatprep.subr.mxu0 0.0
    %503 = vmatpush1.msra.mxu0 %v455
    %504 = vmatprep.subr.mxu0 0.0
    %505 = vmatpush1.msra.mxu0 %v456
    %506 = vmatprep.subr.mxu0 0.0
    %507 = vmatpush1.msra.mxu0 %v457
    %508 = vmatprep.subr.mxu0 0.0
    %509 = vmatpush1.msra.mxu0 %v458
    %510 = vmatprep.subr.mxu0 0.0
    %511 = vmatpush1.msra.mxu0 %v459
    %512 = vmatprep.subr.mxu0 0.0
    %513 = vmatpush1.msra.mxu0 %v460
    %514 = vmatprep.subr.mxu0 0.0
    %515 = vmatpush1.msra.mxu0 %v461
    %516 = vmatprep.subr.mxu0 0.0
    %517 = vmatpush1.msra.mxu0 %v462
    %518 = vmatprep.subr.mxu0 0.0
    %519 = vmatpush1.msra.mxu0 %v463
    %520 = vmatprep.subr.mxu0 0.0
    %521 = vmatpush1.msra.mxu0 %v464
    %522 = vmatprep.subr.mxu0 0.0
    %523 = vmatpush1.msra.mxu0 %v465
    %524 = vmatprep.subr.mxu0 0.0
    %525 = vmatpush1.msra.mxu0 %v466
    %526 = vmatprep.subr.mxu0 0.0
    %527 = vmatpush1.msra.mxu0 %v467
    %528 = vmatprep.subr.mxu0 0.0
    %529 = vmatpush1.msra.mxu0 %v468
    %530 = vmatprep.subr.mxu0 0.0
    %531 = vmatpush1.msra.mxu0 %v469
    %532 = vmatprep.subr.mxu0 0.0
    %533 = vmatpush1.msra.mxu0 %v470
    %534 = vmatprep.subr.mxu0 0.0
    %535 = vmatpush1.msra.mxu0 %v471
    %536 = vmatprep.subr.mxu0 0.0
    %537 = vmatpush1.msra.mxu0 %v472
    %538 = vmatprep.subr.mxu0 0.0
    %539 = vmatpush1.msra.mxu0 %v473
    %540 = vmatprep.subr.mxu0 0.0
    %541 = vmatpush1.msra.mxu0 %v474
    %542 = vmatprep.subr.mxu0 0.0
    %543 = vmatpush1.msra.mxu0 %v475
    %544 = vmatprep.mubr.f32.mxu0 %v443
    %545 = vmatmul.mubr.f32.gmra.mrb[0].mxu0 %v420
    %v546 = vpop.f32.mrb[0].mxu0
    %v547 = vadd.f32 %v479, %v546
    %v548 = vpop.f32.mrb[0].mxu0
    %549 = vdwg.mxu0
    %v550 = vadd.f32 %v547, 1e-05
    %v551 = vsel %vm90, 1, 0
    %vm552 = vcmp.eq.s32.totalorder %v551, 1
    %v553 = vsel %vm552, %v550, -1e+30
    %554 = vmax.xlane.f32.xlu0 %v553
    %v555 = vpop.xlane.xlu0 %554
    %v556 = vsub.f32 %v553, %v555
    %v557 = vmul.f32 %v556, 1.442695
    %v558 = vpow.pop %v557
    %559 = vadd.xlane.f32.xlu0 %v558
    %v560 = vpop.xlane.xlu0 %559
    %v561 = vlog2.pop %v560
    %v562 = vmul.f32 %v561, 0.6931472
    %v563 = vsub.f32 %v556, %v562
    %564 = vmax.xlane.f32.xlu0 %v563
    %v565 = vpop.xlane.xlu0 %564
    %v566 = vsub.f32 %v563, %v565
    %v567 = vmax.f32 %v566, -1e+10
    %v568 = vmin.f32 %v567, 1.0
    %v569 = vmul.f32 %v568, 1.442695
    %v570 = vpow.pop %v569
    %v571 = vadd.f32 %v570, 1e-05
    %v572 = vsel %vm552, %v571, 0.0
    %573 = vadd.xlane.f32.xlu0 %v572
    %v574 = vpop.xlane.xlu0 %573
    %v575 = vrcp.pop %v574
    %v576 = vmul.f32 %v572, %v575
    %vm577 = vcmp.eq.s32.totalorder %v88, 8
    %v578 = vsel %vm577, 1, 0
    %vm579 = vcmp.eq.s32.totalorder %v578, 1
    %v580 = vsel %vm579, %v547, 0.0
    %v581 = vsel %vm552, %v576, %v580
    %582 = vst [vmem:[%s5] sm:$0xff] %v581
    // Predicated region
    $region42: #{net_forward.1} parent=1 // pred_check
      _
    $region43: #{net_forward.1} parent=1 // pred_check_branch
      %584 = sbr.rel (0) target = $region45
    $region44: #{net_forward.1} parent=1 // pred_region
      _
    $region45: #{net_forward.1} parent=1 // pred_fallthru
      _
    // Predicated region
    $region46: #{net_forward.1} parent=1 // pred_check
      _
    $region47: #{net_forward.1} parent=1 // pred_check_branch
      %586 = sbr.rel (0) target = $region49
    $region48: #{net_forward.1} parent=1 // pred_region
      _
    $region49: #{net_forward.1} parent=1 // pred_fallthru
      _
    %587 = vsyncpa [#allocation3], 1
    %588 = vsyncpa [#allocation5], 1
    %589 = vsyncpa [#allocation8], 1

</llo_original>
